<compile_context>
chip_gen: v5e
topology: v5e:2x2
jax: 0.10.0
libtpu: 0.0.40
codegen_flags: <defaults>
</compile_context>

<pallas_src>
import functools
import math

import jax
import jax.numpy as jnp
from jax import lax
from jax.experimental import pallas as pl
from jax.experimental.pallas import tpu as pltpu

_LANES = 128


def _logistic_to_softmax_kernel(x_ref, w_ref, b_ref, out_ref, acc_ref, *,
                                positive, n_slabs):
    """x_ref: (TB, TD)   w_ref: (1, TD)   b_ref: SMEM (1,) f32
    out_ref: (TB, 2)     acc_ref: (TB, 128) f32 lane-wide partial sums,
    resident across the D-reduction grid axis (axis 1)."""
    k = pl.program_id(1)

    @pl.when(k == 0)
    def _():
        acc_ref[...] = jnp.zeros_like(acc_ref)

    # Hot loop: one 128-lane slab at a time.  VPU multiply + full-vreg add into
    # the lane-wide accumulator.  No full-tile f32 temporaries, no per-step
    # cross-lane XLU reduce, no masked single-lane accumulator stores.
    def slab(c, carry):
        off = pl.multiple_of(c * _LANES, _LANES)
        xs = x_ref[:, pl.ds(off, _LANES)].astype(jnp.float32)   # (TB, 128)
        ws = w_ref[:, pl.ds(off, _LANES)].astype(jnp.float32)   # (1, 128)
        acc_ref[...] += xs * ws
        return carry

    lax.fori_loop(0, n_slabs, slab, 0, unroll=True)

    @pl.when(k == pl.num_programs(1) - 1)
    def _():
        # Single cross-lane reduce + scalar bias, once per output tile.
        pred = jnp.sum(acc_ref[...], axis=-1, keepdims=True) + b_ref[0]  # (TB,1)
        tb = out_ref.shape[0]
        # logistic -> pre-softmax 2-class logits via iota + where so the store
        # is one dense (TB, 2) write (no tiny-lane concat).
        col = lax.broadcasted_iota(jnp.int32, (tb, 2), 1)
        pred2 = jnp.broadcast_to(pred, (tb, 2))
        if positive:
            logits = jnp.where(col == 1, pred2, 0.0)    # cat([0, pred], axis=1)
        else:
            logits = jnp.where(col == 0, -pred2, 0.0)   # cat([-pred, 0], axis=1)
        out_ref[...] = logits.astype(out_ref.dtype)


def _round_up(x, m):
    return ((x + m - 1) // m) * m


def _sublane_quantum(dtype):
    """Native sublane packing quantum: 8 for 32-bit, 16 for bf16, 32 for 8-bit."""
    bits = jnp.dtype(dtype).itemsize * 8
    if bits >= 32:
        return 8
    if bits == 16:
        return 16
    return 32


def _choose_tile_and_pad(total, target, quantum):
    """Return (tile, padded): tile is a multiple of `quantum`, <= max(target,
    quantum), divides `padded`, padded >= total, and padding is kept small."""
    if total <= target:
        tile = _round_up(total, quantum)
        return tile, tile
    padded_q = _round_up(total, quantum)            # minimal legal padding
    tile = (target // quantum) * quantum
    while tile > quantum and padded_q % tile != 0:
        tile -= quantum
    # Irregular sizes can force tiny tiles; trade a bounded amount of extra
    # padding for a full-size, pipeline-friendly tile instead.
    if tile < (target // 2):
        full = (target // quantum) * quantum
        padded_full = _round_up(total, full)
        if padded_full - total <= max(total // 8, full):
            return full, padded_full
    return tile, padded_q


def logistic_to_softmax_forward(x_nchw, w, b, *, positive=True):
    """Forward of LogisticToSoftmaxWrapper around a flatten + linear binary head."""
    B = x_nchw.shape[0]
    D = math.prod(x_nchw.shape[1:])
    x_dtype = x_nchw.dtype

    # Tile policy (safe across v5e / v6e / v7x):
    #   * TD <= 2048 lanes -> f32 x tile <= 2 MiB, double-buffered <= 4 MiB:
    #     inside v5e's 16 MiB scoped-VMEM default and v7x's 64 MiB physical.
    #   * TB <= 256 sublanes (dtype-aware quantum), capped so the "parallel"
    #     batch grid axis has >= 2 blocks whenever B allows it (v7x megacore).
    #   * Irregular B / D handled by wrapper-side zero padding, never by a
    #     monolithic untiled block.
    tb_quantum = _sublane_quantum(x_dtype)
    tb_target = 256
    if B >= 2 * tb_quantum:
        tb_target = min(tb_target,
                        max(tb_quantum, (B // (2 * tb_quantum)) * tb_quantum))
    TB, B_pad = _choose_tile_and_pad(B, tb_target, tb_quantum)
    TD, D_pad = _choose_tile_and_pad(D, 2048, _LANES)

    # Row-major NCHW -> (B, D) flatten is contiguous (free).  No dtype cast
    # here: the kernel casts one 128-lane slab at a time, so bf16/int8 inputs
    # keep their reduced HBM traffic.
    x_flat = x_nchw.reshape(B, D)
    w_row = w.reshape(1, D)                          # lane-dense weight layout
    if B_pad != B or D_pad != D:
        x_flat = jnp.pad(x_flat, ((0, B_pad - B), (0, D_pad - D)))
    if D_pad != D:
        w_row = jnp.pad(w_row, ((0, 0), (0, D_pad - D)))
    b_smem = b.reshape(1).astype(jnp.float32)        # scalar bias via SMEM

    grid = (B_pad // TB, D_pad // TD)
    n_slabs = TD // _LANES

    itemsize_x = jnp.dtype(x_dtype).itemsize
    itemsize_w = jnp.dtype(w_row.dtype).itemsize
    cost = pl.CostEstimate(
        flops=2 * B_pad * D_pad,
        transcendentals=0,
        bytes_accessed=B_pad * D_pad * itemsize_x + D_pad * itemsize_w
        + B_pad * 2 * 4,
    )

    # Scoped-VMEM request: double-buffered x + w tiles, accumulator, output,
    # with 2x headroom for in-kernel slab temporaries; clamped inside every
    # generation's physical VMEM (v7x: 64 MiB per TensorCore).
    vmem_bytes = (2 * TB * TD * itemsize_x + 2 * TD * itemsize_w
                  + TB * _LANES * 4 + 2 * TB * 2 * 4)
    vmem_limit = int(min(max(2 * vmem_bytes, 32 * 1024 * 1024),
                         64 * 1024 * 1024))

    kernel = functools.partial(_logistic_to_softmax_kernel,
                               positive=positive, n_slabs=n_slabs)
    out = pl.pallas_call(
        kernel,
        out_shape=jax.ShapeDtypeStruct((B_pad, 2), jnp.float32),
        grid=grid,
        in_specs=[
            pl.BlockSpec((TB, TD), lambda i, k: (i, k)),
            pl.BlockSpec((1, TD), lambda i, k: (0, k)),   # w shared across batch
            pl.BlockSpec(memory_space=pltpu.MemorySpace.SMEM),
        ],
        out_specs=pl.BlockSpec((TB, 2), lambda i, k: (i, 0)),
        scratch_shapes=[pltpu.VMEM((TB, _LANES), jnp.float32)],
        compiler_params=pltpu.CompilerParams(
            dimension_semantics=("parallel", "arbitrary"),
            vmem_limit_bytes=vmem_limit),
        cost_estimate=cost,
    )(x_flat, w_row, b_smem)
    return out[:B]


if __name__ == "__main__":
    key = jax.random.PRNGKey(0)
    kx, kw, kb = jax.random.split(key, 3)

    B, C, H, W = 2, 4, 16, 16
    D = C * H * W

    # Deterministic synthetic inputs / parameters.
    x = jax.random.normal(kx, (B, C, H, W), dtype=jnp.float32)
    w = jax.random.normal(kw, (D, 1), dtype=jnp.float32) * 0.05
    b = jax.random.normal(kb, (1,), dtype=jnp.float32)

    # positive=True branch
    out_pos = jax.block_until_ready(
        logistic_to_softmax_forward(x, w, b, positive=True)
    )
    # positive=False branch
    out_neg = jax.block_until_ready(
        logistic_to_softmax_forward(x, w, b, positive=False)
    )

    # Pure-JAX reference of the same forward semantics.
    x_flat = x.reshape(B, D)
    pred = x_flat @ w + b                               # (B, 1)
    zero = jnp.zeros_like(pred)
    ref_pos = jnp.concatenate([zero, pred], axis=1)     # (B, 2)
    ref_neg = jnp.concatenate([-pred, zero], axis=1)    # (B, 2)

    assert out_pos.shape == (B, 2) and out_neg.shape == (B, 2)
    assert jnp.allclose(out_pos, ref_pos, atol=1e-4, rtol=1e-4)
    assert jnp.allclose(out_neg, ref_neg, atol=1e-4, rtol=1e-4)

    print("KERNEL_OK")
</pallas_src>

<mosaic_0001>
module attributes {stable_mosaic.version = 11 : i64} {
  func.func @_logistic_to_softmax_kernel(%arg0: i32, %arg1: i32, %arg2: memref<8x1024xf32, #tpu.memory_space<vmem>>, %arg3: memref<1x1024xf32, #tpu.memory_space<vmem>>, %arg4: memref<1xf32, #tpu.memory_space<smem>>, %arg5: memref<8x2xf32, #tpu.memory_space<vmem>>, %arg6: memref<8x128xf32, #tpu.memory_space<vmem>>) attributes {dimension_semantics = [#tpu.dimension_semantics<parallel>, #tpu.dimension_semantics<arbitrary>], iteration_bounds = array<i64: 1, 1>, scalar_prefetch = 0 : i64, scratch_operands = 1 : i64, tpu.core_type = #tpu.core_type<tc>, window_params = [{transform_indices = @transform_0, window_bounds = array<i64: 8, 1024>}, {transform_indices = @transform_1, window_bounds = array<i64: 1, 1024>}, {transform_indices = @transform_2, window_bounds = array<i64: 1>}, {transform_indices = @transform_3, window_bounds = array<i64: 8, 2>}]} {
    %c0_i32 = arith.constant 0 : i32
    %0 = arith.cmpi eq, %arg1, %c0_i32 : i32
    %1 = arith.extui %0 : i1 to i32
    %c0_i32_0 = arith.constant 0 : i32
    %2 = arith.cmpi ne, %1, %c0_i32_0 : i32
    scf.if %2 {
      %cst = arith.constant 0.000000e+00 : f32
      %94 = vector.broadcast %cst : f32 to vector<8x128xf32>
      %c0_58 = arith.constant 0 : index
      %c0_59 = arith.constant 0 : index
      %95 = vector.load %arg6[%c0_58, %c0_59] : memref<8x128xf32, #tpu.memory_space<vmem>>, vector<8x128xf32>
      tpu.vector_store %arg6[%c0_58, %c0_59], %94 {strides = array<i32>} : memref<8x128xf32, #tpu.memory_space<vmem>>, vector<8x128xf32>,
    } else {
    }
    %c0_i32_1 = arith.constant 0 : i32
    %c128_i32 = arith.constant 128 : i32
    %3 = arith.muli %c0_i32_1, %c128_i32 : i32
    %4 = tpu.assume_multiple %3, 128 : i32
    %c0 = arith.constant 0 : index
    %5 = arith.index_cast %4 : i32 to index
    %6 = vector.load %arg2[%c0, %5] : memref<8x1024xf32, #tpu.memory_space<vmem>>, vector<8x128xf32>
    %c0_2 = arith.constant 0 : index
    %7 = arith.index_cast %4 : i32 to index
    %8 = vector.load %arg3[%c0_2, %7] : memref<1x1024xf32, #tpu.memory_space<vmem>>, vector<1x128xf32>
    %c0_3 = arith.constant 0 : index
    %c0_4 = arith.constant 0 : index
    %9 = vector.load %arg6[%c0_3, %c0_4] : memref<8x128xf32, #tpu.memory_space<vmem>>, vector<8x128xf32>
    %10 = vector.broadcast %8 : vector<1x128xf32> to vector<8x128xf32>
    %11 = arith.mulf %6, %10 : vector<8x128xf32>
    %12 = arith.addf %9, %11 : vector<8x128xf32>
    %c0_5 = arith.constant 0 : index
    %c0_6 = arith.constant 0 : index
    %13 = vector.load %arg6[%c0_5, %c0_6] : memref<8x128xf32, #tpu.memory_space<vmem>>, vector<8x128xf32>
    tpu.vector_store %arg6[%c0_5, %c0_6], %12 {strides = array<i32>} : memref<8x128xf32, #tpu.memory_space<vmem>>, vector<8x128xf32>,
    %c1_i32 = arith.constant 1 : i32
    %c128_i32_7 = arith.constant 128 : i32
    %14 = arith.muli %c1_i32, %c128_i32_7 : i32
    %15 = tpu.assume_multiple %14, 128 : i32
    %c0_8 = arith.constant 0 : index
    %16 = arith.index_cast %15 : i32 to index
    %17 = vector.load %arg2[%c0_8, %16] : memref<8x1024xf32, #tpu.memory_space<vmem>>, vector<8x128xf32>
    %c0_9 = arith.constant 0 : index
    %18 = arith.index_cast %15 : i32 to index
    %19 = vector.load %arg3[%c0_9, %18] : memref<1x1024xf32, #tpu.memory_space<vmem>>, vector<1x128xf32>
    %c0_10 = arith.constant 0 : index
    %c0_11 = arith.constant 0 : index
    %20 = vector.load %arg6[%c0_10, %c0_11] : memref<8x128xf32, #tpu.memory_space<vmem>>, vector<8x128xf32>
    %21 = vector.broadcast %19 : vector<1x128xf32> to vector<8x128xf32>
    %22 = arith.mulf %17, %21 : vector<8x128xf32>
    %23 = arith.addf %20, %22 : vector<8x128xf32>
    %c0_12 = arith.constant 0 : index
    %c0_13 = arith.constant 0 : index
    %24 = vector.load %arg6[%c0_12, %c0_13] : memref<8x128xf32, #tpu.memory_space<vmem>>, vector<8x128xf32>
    tpu.vector_store %arg6[%c0_12, %c0_13], %23 {strides = array<i32>} : memref<8x128xf32, #tpu.memory_space<vmem>>, vector<8x128xf32>,
    %c2_i32 = arith.constant 2 : i32
    %c128_i32_14 = arith.constant 128 : i32
    %25 = arith.muli %c2_i32, %c128_i32_14 : i32
    %26 = tpu.assume_multiple %25, 128 : i32
    %c0_15 = arith.constant 0 : index
    %27 = arith.index_cast %26 : i32 to index
    %28 = vector.load %arg2[%c0_15, %27] : memref<8x1024xf32, #tpu.memory_space<vmem>>, vector<8x128xf32>
    %c0_16 = arith.constant 0 : index
    %29 = arith.index_cast %26 : i32 to index
    %30 = vector.load %arg3[%c0_16, %29] : memref<1x1024xf32, #tpu.memory_space<vmem>>, vector<1x128xf32>
    %c0_17 = arith.constant 0 : index
    %c0_18 = arith.constant 0 : index
    %31 = vector.load %arg6[%c0_17, %c0_18] : memref<8x128xf32, #tpu.memory_space<vmem>>, vector<8x128xf32>
    %32 = vector.broadcast %30 : vector<1x128xf32> to vector<8x128xf32>
    %33 = arith.mulf %28, %32 : vector<8x128xf32>
    %34 = arith.addf %31, %33 : vector<8x128xf32>
    %c0_19 = arith.constant 0 : index
    %c0_20 = arith.constant 0 : index
    %35 = vector.load %arg6[%c0_19, %c0_20] : memref<8x128xf32, #tpu.memory_space<vmem>>, vector<8x128xf32>
    tpu.vector_store %arg6[%c0_19, %c0_20], %34 {strides = array<i32>} : memref<8x128xf32, #tpu.memory_space<vmem>>, vector<8x128xf32>,
    %c3_i32 = arith.constant 3 : i32
    %c128_i32_21 = arith.constant 128 : i32
    %36 = arith.muli %c3_i32, %c128_i32_21 : i32
    %37 = tpu.assume_multiple %36, 128 : i32
    %c0_22 = arith.constant 0 : index
    %38 = arith.index_cast %37 : i32 to index
    %39 = vector.load %arg2[%c0_22, %38] : memref<8x1024xf32, #tpu.memory_space<vmem>>, vector<8x128xf32>
    %c0_23 = arith.constant 0 : index
    %40 = arith.index_cast %37 : i32 to index
    %41 = vector.load %arg3[%c0_23, %40] : memref<1x1024xf32, #tpu.memory_space<vmem>>, vector<1x128xf32>
    %c0_24 = arith.constant 0 : index
    %c0_25 = arith.constant 0 : index
    %42 = vector.load %arg6[%c0_24, %c0_25] : memref<8x128xf32, #tpu.memory_space<vmem>>, vector<8x128xf32>
    %43 = vector.broadcast %41 : vector<1x128xf32> to vector<8x128xf32>
    %44 = arith.mulf %39, %43 : vector<8x128xf32>
    %45 = arith.addf %42, %44 : vector<8x128xf32>
    %c0_26 = arith.constant 0 : index
    %c0_27 = arith.constant 0 : index
    %46 = vector.load %arg6[%c0_26, %c0_27] : memref<8x128xf32, #tpu.memory_space<vmem>>, vector<8x128xf32>
    tpu.vector_store %arg6[%c0_26, %c0_27], %45 {strides = array<i32>} : memref<8x128xf32, #tpu.memory_space<vmem>>, vector<8x128xf32>,
    %c4_i32 = arith.constant 4 : i32
    %c128_i32_28 = arith.constant 128 : i32
    %47 = arith.muli %c4_i32, %c128_i32_28 : i32
    %48 = tpu.assume_multiple %47, 128 : i32
    %c0_29 = arith.constant 0 : index
    %49 = arith.index_cast %48 : i32 to index
    %50 = vector.load %arg2[%c0_29, %49] : memref<8x1024xf32, #tpu.memory_space<vmem>>, vector<8x128xf32>
    %c0_30 = arith.constant 0 : index
    %51 = arith.index_cast %48 : i32 to index
    %52 = vector.load %arg3[%c0_30, %51] : memref<1x1024xf32, #tpu.memory_space<vmem>>, vector<1x128xf32>
    %c0_31 = arith.constant 0 : index
    %c0_32 = arith.constant 0 : index
    %53 = vector.load %arg6[%c0_31, %c0_32] : memref<8x128xf32, #tpu.memory_space<vmem>>, vector<8x128xf32>
    %54 = vector.broadcast %52 : vector<1x128xf32> to vector<8x128xf32>
    %55 = arith.mulf %50, %54 : vector<8x128xf32>
    %56 = arith.addf %53, %55 : vector<8x128xf32>
    %c0_33 = arith.constant 0 : index
    %c0_34 = arith.constant 0 : index
    %57 = vector.load %arg6[%c0_33, %c0_34] : memref<8x128xf32, #tpu.memory_space<vmem>>, vector<8x128xf32>
    tpu.vector_store %arg6[%c0_33, %c0_34], %56 {strides = array<i32>} : memref<8x128xf32, #tpu.memory_space<vmem>>, vector<8x128xf32>,
    %c5_i32 = arith.constant 5 : i32
    %c128_i32_35 = arith.constant 128 : i32
    %58 = arith.muli %c5_i32, %c128_i32_35 : i32
    %59 = tpu.assume_multiple %58, 128 : i32
    %c0_36 = arith.constant 0 : index
    %60 = arith.index_cast %59 : i32 to index
    %61 = vector.load %arg2[%c0_36, %60] : memref<8x1024xf32, #tpu.memory_space<vmem>>, vector<8x128xf32>
    %c0_37 = arith.constant 0 : index
    %62 = arith.index_cast %59 : i32 to index
    %63 = vector.load %arg3[%c0_37, %62] : memref<1x1024xf32, #tpu.memory_space<vmem>>, vector<1x128xf32>
    %c0_38 = arith.constant 0 : index
    %c0_39 = arith.constant 0 : index
    %64 = vector.load %arg6[%c0_38, %c0_39] : memref<8x128xf32, #tpu.memory_space<vmem>>, vector<8x128xf32>
    %65 = vector.broadcast %63 : vector<1x128xf32> to vector<8x128xf32>
    %66 = arith.mulf %61, %65 : vector<8x128xf32>
    %67 = arith.addf %64, %66 : vector<8x128xf32>
    %c0_40 = arith.constant 0 : index
    %c0_41 = arith.constant 0 : index
    %68 = vector.load %arg6[%c0_40, %c0_41] : memref<8x128xf32, #tpu.memory_space<vmem>>, vector<8x128xf32>
    tpu.vector_store %arg6[%c0_40, %c0_41], %67 {strides = array<i32>} : memref<8x128xf32, #tpu.memory_space<vmem>>, vector<8x128xf32>,
    %c6_i32 = arith.constant 6 : i32
    %c128_i32_42 = arith.constant 128 : i32
    %69 = arith.muli %c6_i32, %c128_i32_42 : i32
    %70 = tpu.assume_multiple %69, 128 : i32
    %c0_43 = arith.constant 0 : index
    %71 = arith.index_cast %70 : i32 to index
    %72 = vector.load %arg2[%c0_43, %71] : memref<8x1024xf32, #tpu.memory_space<vmem>>, vector<8x128xf32>
    %c0_44 = arith.constant 0 : index
    %73 = arith.index_cast %70 : i32 to index
    %74 = vector.load %arg3[%c0_44, %73] : memref<1x1024xf32, #tpu.memory_space<vmem>>, vector<1x128xf32>
    %c0_45 = arith.constant 0 : index
    %c0_46 = arith.constant 0 : index
    %75 = vector.load %arg6[%c0_45, %c0_46] : memref<8x128xf32, #tpu.memory_space<vmem>>, vector<8x128xf32>
    %76 = vector.broadcast %74 : vector<1x128xf32> to vector<8x128xf32>
    %77 = arith.mulf %72, %76 : vector<8x128xf32>
    %78 = arith.addf %75, %77 : vector<8x128xf32>
    %c0_47 = arith.constant 0 : index
    %c0_48 = arith.constant 0 : index
    %79 = vector.load %arg6[%c0_47, %c0_48] : memref<8x128xf32, #tpu.memory_space<vmem>>, vector<8x128xf32>
    tpu.vector_store %arg6[%c0_47, %c0_48], %78 {strides = array<i32>} : memref<8x128xf32, #tpu.memory_space<vmem>>, vector<8x128xf32>,
    %c7_i32 = arith.constant 7 : i32
    %c128_i32_49 = arith.constant 128 : i32
    %80 = arith.muli %c7_i32, %c128_i32_49 : i32
    %81 = tpu.assume_multiple %80, 128 : i32
    %c0_50 = arith.constant 0 : index
    %82 = arith.index_cast %81 : i32 to index
    %83 = vector.load %arg2[%c0_50, %82] : memref<8x1024xf32, #tpu.memory_space<vmem>>, vector<8x128xf32>
    %c0_51 = arith.constant 0 : index
    %84 = arith.index_cast %81 : i32 to index
    %85 = vector.load %arg3[%c0_51, %84] : memref<1x1024xf32, #tpu.memory_space<vmem>>, vector<1x128xf32>
    %c0_52 = arith.constant 0 : index
    %c0_53 = arith.constant 0 : index
    %86 = vector.load %arg6[%c0_52, %c0_53] : memref<8x128xf32, #tpu.memory_space<vmem>>, vector<8x128xf32>
    %87 = vector.broadcast %85 : vector<1x128xf32> to vector<8x128xf32>
    %88 = arith.mulf %83, %87 : vector<8x128xf32>
    %89 = arith.addf %86, %88 : vector<8x128xf32>
    %c0_54 = arith.constant 0 : index
    %c0_55 = arith.constant 0 : index
    %90 = vector.load %arg6[%c0_54, %c0_55] : memref<8x128xf32, #tpu.memory_space<vmem>>, vector<8x128xf32>
    tpu.vector_store %arg6[%c0_54, %c0_55], %89 {strides = array<i32>} : memref<8x128xf32, #tpu.memory_space<vmem>>, vector<8x128xf32>,
    %c8_i32 = arith.constant 8 : i32
    %c0_i32_56 = arith.constant 0 : i32
    %91 = arith.cmpi eq, %arg1, %c0_i32_56 : i32
    %92 = arith.extui %91 : i1 to i32
    %c0_i32_57 = arith.constant 0 : i32
    %93 = arith.cmpi ne, %92, %c0_i32_57 : i32
    scf.if %93 {
      %c0_58 = arith.constant 0 : index
      %c0_59 = arith.constant 0 : index
      %94 = vector.load %arg6[%c0_58, %c0_59] : memref<8x128xf32, #tpu.memory_space<vmem>>, vector<8x128xf32>
      %cst = arith.constant dense<0.000000e+00> : vector<8xf32>
      %95 = vector.multi_reduction <add>, %94, %cst [1] : vector<8x128xf32> to vector<8xf32>
      %96 = vector.shape_cast %95 : vector<8xf32> to vector<8x1xf32>
      %c0_60 = arith.constant 0 : index
      %97 = memref.load %arg4[%c0_60] : memref<1xf32, #tpu.memory_space<smem>>
      %98 = vector.broadcast %97 : f32 to vector<8x1xf32>
      %99 = arith.addf %96, %98 : vector<8x1xf32>
      %100 = tpu.iota {dimensions = array<i32: 1>} : vector<8x2xi32>
      %101 = vector.shape_cast %99 : vector<8x1xf32> to vector<8x1xf32>
      %102 = vector.broadcast %101 : vector<8x1xf32> to vector<8x2xf32>
      %c1_i32_61 = arith.constant 1 : i32
      %103 = vector.broadcast %c1_i32_61 : i32 to vector<8x2xi32>
      %104 = arith.cmpi eq, %100, %103 : vector<8x2xi32>
      %cst_62 = arith.constant 0.000000e+00 : f32
      %105 = vector.broadcast %cst_62 : f32 to vector<8x2xf32>
      %106 = arith.select %104, %102, %105 : vector<8x2xi1>, vector<8x2xf32>
      %c0_63 = arith.constant 0 : index
      %c0_64 = arith.constant 0 : index
      %107 = vector.load %arg5[%c0_63, %c0_64] : memref<8x2xf32, #tpu.memory_space<vmem>>, vector<8x2xf32>
      tpu.vector_store %arg5[%c0_63, %c0_64], %106 {strides = array<i32>} : memref<8x2xf32, #tpu.memory_space<vmem>>, vector<8x2xf32>,
    } else {
    }
    return
  }
  func.func @transform_0(%arg0: i32, %arg1: i32) -> (i32, i32) {
    %c0_i32 = arith.constant 0 : i32
    return %arg0, %arg1 : i32, i32
  }
  func.func @transform_1(%arg0: i32, %arg1: i32) -> (i32, i32) {
    %c0_i32 = arith.constant 0 : i32
    %c0_i32_0 = arith.constant 0 : i32
    return %c0_i32, %arg1 : i32, i32
  }
  func.func @transform_2(%arg0: i32, %arg1: i32) -> i32 {
    %c0_i32 = arith.constant 0 : i32
    %c0_i32_0 = arith.constant 0 : i32
    return %c0_i32 : i32
  }
  func.func @transform_3(%arg0: i32, %arg1: i32) -> (i32, i32) {
    %c0_i32 = arith.constant 0 : i32
    %c0_i32_0 = arith.constant 0 : i32
    return %arg0, %c0_i32 : i32, i32
  }
}

</mosaic_0001>

<llo_original>
// kernel: tpu_custom_call.1
$region0: #{tpu_custom_call.1}
  #allocation0 [shape = 'u32[]', space=smem, size = 0x4, offset = 0x4, fixed_abs, tag = 'smem constant byte address 0x4 - core index']
  #allocation1 [shape = 'u32[72,128]{1,0:T(1,128)}', space=vmem, size = 0x9000, scoped, tag = 'internal scratch']
  #allocation2 [shape = 'f32[8,128]{1,0:T(8,128)}', space=vmem, size = 0x1000, scoped, tag = 'scratch operand']
  #allocation3 [shape = 'f32[1]{0:T(128)S(6)}', space=smem, size = 0x200, scoped, tag = 'scoped memory for tpu_custom_call.1']
  %s0 = inlined_call_operand.hbm [shape: f32[8,1024], index: 0, kind: input, shape index: {}]
  %s1 = inlined_call_operand.hbm [shape: f32[1,1024], index: 1, kind: input, shape index: {}]
  %s2 = inlined_call_operand.<no memory space> [shape: f32[1], index: 2, kind: input, shape index: {}]
  %s3 = inlined_call_operand.vmem [shape: f32[8,2], index: 3, kind: output, shape index: {}]
  %s4 = sld [smem:[#allocation0]]
  $region38: #{tpu_custom_call.1} parent=0
    _
  %s6 = ssub.s32 1, %s4
  %s7 = scalar_select 0, %s6, %s4
  %8 = sst [smem:[#allocation3]] %s2
  $region1: #{tpu_custom_call.1} parent=0
    #allocation4 [shape = 'u8[32768]{0}', space=vmem, size = 0x8000, scoped, tag = 'input window, operand 0, single buffered']
    #allocation5 [shape = 's32[1]{0}', space=sflag, size = 0x4, scoped, tag = 'scoped memory for tpu_custom_call.1']
    #allocation6 [shape = 'u8[4096]{0}', space=vmem, size = 0x1000, scoped, tag = 'input window, operand 1, single buffered']
    #allocation7 [shape = 's32[1]{0}', space=sflag, size = 0x4, scoped, tag = 'scoped memory for tpu_custom_call.1']
    %9 = vsyncpa [#allocation5], 0
    %10 = vsyncpa [#allocation7], 0
    // Predicated region
    $region2: #{tpu_custom_call.1} parent=1 // pred_check
      _
    $region3: #{tpu_custom_call.1} parent=1 // pred_check_branch
      %12 = sbr.rel (0) target = $region5
    $region4: #{tpu_custom_call.1} parent=1 // pred_region
      %14 = vsyncadd [#allocation5], 0
      %s16 = sshll.u32 %s0, 4
      %s17 = int_to_ptr.hbm [resolvable:$true] %s16
      %s18 = sshll.u32 [#allocation4], 4
      %s19 = int_to_ptr.vmem [resolvable:$true] %s18
      %21 = dma.hbm_to_vmem [thread:$0]  %s17, 1024, %s19, [#allocation5]
    $region5: #{tpu_custom_call.1} parent=1 // pred_fallthru
      _
    // Predicated region
    $region6: #{tpu_custom_call.1} parent=1 // pred_check
      _
    $region7: #{tpu_custom_call.1} parent=1 // pred_check_branch
      %23 = sbr.rel (0) target = $region9
    $region8: #{tpu_custom_call.1} parent=1 // pred_region
      %25 = vsyncadd [#allocation7], 0
      %s27 = sshll.u32 %s1, 4
      %s28 = int_to_ptr.hbm [resolvable:$true] %s27
      %s29 = sshll.u32 [#allocation6], 4
      %s30 = int_to_ptr.vmem [resolvable:$true] %s29
      %32 = dma.hbm_to_vmem [thread:$0]  %s28, 128, %s30, [#allocation7]
    $region9: #{tpu_custom_call.1} parent=1 // pred_fallthru
      _
    // Predicated region
    $region10: #{tpu_custom_call.1} parent=1 // pred_check
      _
    $region11: #{tpu_custom_call.1} parent=1 // pred_check_branch
      %34 = sbr.rel (0) target = $region13
    $region12: #{tpu_custom_call.1} parent=1 // pred_region
      _
    $region13: #{tpu_custom_call.1} parent=1 // pred_fallthru
      _
    // Predicated region
    $region14: #{tpu_custom_call.1} parent=1 // pred_check
      _
    $region15: #{tpu_custom_call.1} parent=1 // pred_check_branch
      %36 = sbr.rel (0) target = $region17
    $region16: #{tpu_custom_call.1} parent=1 // pred_region
      %38 = dma.done [#allocation5], 1024
    $region17: #{tpu_custom_call.1} parent=1 // pred_fallthru
      _
    // Predicated region
    $region18: #{tpu_custom_call.1} parent=1 // pred_check
      _
    $region19: #{tpu_custom_call.1} parent=1 // pred_check_branch
      %40 = sbr.rel (0) target = $region21
    $region20: #{tpu_custom_call.1} parent=1 // pred_region
      %42 = dma.done [#allocation7], 128
    $region21: #{tpu_custom_call.1} parent=1 // pred_fallthru
      _
    %p43 = scmp.eq.s32.totalorder 0, 0
    // Predicated region
    $region22: #{tpu_custom_call.1} parent=1 // pred_check
      %p44 = pneg %p43
    $region23: #{tpu_custom_call.1} parent=1 // pred_check_branch
      %46 = sbr.rel (%p44) target = $region25
    $region24: #{tpu_custom_call.1} parent=1 // pred_region
      %47 = vst [vmem:[#allocation2] sm:$0xff] 0.0
    $region25: #{tpu_custom_call.1} parent=1 // pred_fallthru
      _
    %v48 = vld [vmem:[#allocation4] sm:$0xff]
    %v49 = vld [vmem:[#allocation6] sm:$0x1]
    %v50 = vld [vmem:[#allocation2] sm:$0xff]
    %v52 = vperm.slane %v49, 0
    %v54 = vmul.f32 %v48, %v52
    %v55 = vadd.f32 %v50, %v54
    %56 = vst [vmem:[#allocation2] sm:$0xff] %v55
    %s57 = scalar_lea.vmem [#allocation4], 8
    %v58 = vld [vmem:[%s57] sm:$0xff]
    %s59 = scalar_lea.vmem [#allocation6], 1
    %v60 = vld [vmem:[%s59] sm:$0x1]
    %v61 = vld [vmem:[#allocation2] sm:$0xff]
    %v63 = vperm.slane %v60, 0
    %v65 = vmul.f32 %v58, %v63
    %v66 = vadd.f32 %v61, %v65
    %67 = vst [vmem:[#allocation2] sm:$0xff] %v66
    %s68 = scalar_lea.vmem [#allocation4], 16
    %v69 = vld [vmem:[%s68] sm:$0xff]
    %s70 = scalar_lea.vmem [#allocation6], 2
    %v71 = vld [vmem:[%s70] sm:$0x1]
    %v72 = vld [vmem:[#allocation2] sm:$0xff]
    %v74 = vperm.slane %v71, 0
    %v76 = vmul.f32 %v69, %v74
    %v77 = vadd.f32 %v72, %v76
    %78 = vst [vmem:[#allocation2] sm:$0xff] %v77
    %s79 = scalar_lea.vmem [#allocation4], 24
    %v80 = vld [vmem:[%s79] sm:$0xff]
    %s81 = scalar_lea.vmem [#allocation6], 3
    %v82 = vld [vmem:[%s81] sm:$0x1]
    %v83 = vld [vmem:[#allocation2] sm:$0xff]
    %v85 = vperm.slane %v82, 0
    %v87 = vmul.f32 %v80, %v85
    %v88 = vadd.f32 %v83, %v87
    %89 = vst [vmem:[#allocation2] sm:$0xff] %v88
    %s90 = scalar_lea.vmem [#allocation4], 32
    %v91 = vld [vmem:[%s90] sm:$0xff]
    %s92 = scalar_lea.vmem [#allocation6], 4
    %v93 = vld [vmem:[%s92] sm:$0x1]
    %v94 = vld [vmem:[#allocation2] sm:$0xff]
    %v96 = vperm.slane %v93, 0
    %v98 = vmul.f32 %v91, %v96
    %v99 = vadd.f32 %v94, %v98
    %100 = vst [vmem:[#allocation2] sm:$0xff] %v99
    %s101 = scalar_lea.vmem [#allocation4], 40
    %v102 = vld [vmem:[%s101] sm:$0xff]
    %s103 = scalar_lea.vmem [#allocation6], 5
    %v104 = vld [vmem:[%s103] sm:$0x1]
    %v105 = vld [vmem:[#allocation2] sm:$0xff]
    %v107 = vperm.slane %v104, 0
    %v109 = vmul.f32 %v102, %v107
    %v110 = vadd.f32 %v105, %v109
    %111 = vst [vmem:[#allocation2] sm:$0xff] %v110
    %s112 = scalar_lea.vmem [#allocation4], 48
    %v113 = vld [vmem:[%s112] sm:$0xff]
    %s114 = scalar_lea.vmem [#allocation6], 6
    %v115 = vld [vmem:[%s114] sm:$0x1]
    %v116 = vld [vmem:[#allocation2] sm:$0xff]
    %v118 = vperm.slane %v115, 0
    %v120 = vmul.f32 %v113, %v118
    %v121 = vadd.f32 %v116, %v120
    %122 = vst [vmem:[#allocation2] sm:$0xff] %v121
    %s123 = scalar_lea.vmem [#allocation4], 56
    %v124 = vld [vmem:[%s123] sm:$0xff]
    %s125 = scalar_lea.vmem [#allocation6], 7
    %v126 = vld [vmem:[%s125] sm:$0x1]
    %v127 = vld [vmem:[#allocation2] sm:$0xff]
    %v129 = vperm.slane %v126, 0
    %v131 = vmul.f32 %v124, %v129
    %v132 = vadd.f32 %v127, %v131
    %133 = vst [vmem:[#allocation2] sm:$0xff] %v132
    // Predicated region
    $region26: #{tpu_custom_call.1} parent=1 // pred_check
      %p134 = pneg %p43
    $region27: #{tpu_custom_call.1} parent=1 // pred_check_branch
      %136 = sbr.rel (%p134) target = $region29
    $region28: #{tpu_custom_call.1} parent=1 // pred_region
      %v137 = vld [vmem:[#allocation2] sm:$0xff]
      %138 = vadd.xlane.f32.xlu0 %v137
      %v139 = vpop.xlane.xlu0 %138
      %s140 = sld [smem:[#allocation3]]
      %v141 = vstv %s140
      %v142 = vadd.f32 %v139, %v141
      %v143 = vlaneseq
      %v144 = vand.u32 %v143, 127
      %vm145 = vcmp.eq.s32.totalorder %v144, 1
      %v146 = vsel %vm145, %v142, 0.0
      %vm147 = vcmask 15360
      %148 = vst.msk [vmem:[%s3] sm:$0xff] %vm147, %v146
    $region29: #{tpu_custom_call.1} parent=1 // pred_fallthru
      _
    // Predicated region
    $region30: #{tpu_custom_call.1} parent=1 // pred_check
      _
    $region31: #{tpu_custom_call.1} parent=1 // pred_check_branch
      %150 = sbr.rel (0) target = $region33
    $region32: #{tpu_custom_call.1} parent=1 // pred_region
      _
    $region33: #{tpu_custom_call.1} parent=1 // pred_fallthru
      _
    // Predicated region
    $region34: #{tpu_custom_call.1} parent=1 // pred_check
      _
    $region35: #{tpu_custom_call.1} parent=1 // pred_check_branch
      %152 = sbr.rel (0) target = $region37
    $region36: #{tpu_custom_call.1} parent=1 // pred_region
      _
    $region37: #{tpu_custom_call.1} parent=1 // pred_fallthru
      _
    %153 = vsyncpa [#allocation5], 1
    %154 = vsyncpa [#allocation7], 1

</llo_original>
